<compile_context>
chip_gen: v7x
topology: tpu7x:2x2x1
jax: 0.10.0
libtpu: 0.0.40
codegen_flags: <defaults>
</compile_context>

<pallas_src>
import functools

import jax
import jax.numpy as jnp
from jax.experimental import pallas as pl
from jax.experimental.pallas import tpu as pltpu


def _round_up(x, m):
    return ((x + m - 1) // m) * m


def _sublane_multiple(dtype):
    # Minimum second-to-last tile dim: f32 -> 8, bf16 -> 16, int8/fp8 -> 32.
    return max(8, 32 // jnp.dtype(dtype).itemsize)


def _pick_tile(dim, pref, align):
    """Largest tile <= pref (multiple of `align`); prefer one that divides the
    true dim exactly so the wrapper never pads (and re-copies) the operand."""
    pref = max((pref // align) * align, align)
    dim_aligned = _round_up(dim, align)
    if dim_aligned <= pref:
        return dim_aligned
    t = pref
    while t >= align and dim % t != 0:
        t -= align
    if t >= align and dim % t == 0 and 2 * t >= pref:
        return t           # exact divisor, still big enough for good reuse
    return pref            # fall back: pad the dim up to a multiple of pref


def _vmem_capacity_bytes():
    default = 64 << 20      # conservative: v7x has 64 MiB per TensorCore
    get_info = getattr(pltpu, "get_tpu_info", None)
    if get_info is None:
        return default
    try:
        cap = getattr(get_info(), "vmem_capacity_bytes", None)
        return int(cap) if cap else default
    except Exception:
        return default


def _generation_defaults():
    cap = _vmem_capacity_bytes()
    if cap >= (96 << 20):
        # v5e / v6e: 128 MiB VMEM -> big resident tiles, ~100 MiB scoped limit.
        return dict(tm=1024, tn=1024, tk=512, vmem_cap=int(cap * 0.78))
    # v7x-class (64 MiB / TC): mid-size tiles, leave compiler scratch headroom.
    return dict(tm=512, tn=1024, tk=512, vmem_cap=int(cap * 0.75))


def _linear_kernel_acc(x_ref, w_ref, b_ref, o_ref, acc_ref):
    # x_ref: (tm, tk)   w_ref: (tk, tn) [already W^T]   b_ref: (1, tn) f32
    # o_ref: (tm, tn)   acc_ref: (tm, tn) f32 scratch
    k = pl.program_id(2)

    @pl.when(k == 0)
    def _():
        acc_ref[...] = jnp.zeros_like(acc_ref)

    acc_ref[...] += jnp.dot(x_ref[...], w_ref[...],
                            preferred_element_type=jnp.float32)

    @pl.when(k == pl.num_programs(2) - 1)
    def _():
        o_ref[...] = (acc_ref[...] + b_ref[...]).astype(o_ref.dtype)


def _linear_kernel_f32(x_ref, w_ref, b_ref, o_ref):
    # f32 output: accumulate directly in the resident output tile (saves
    # tm*tn*4 B of VMEM and the epilogue copy/cast).
    k = pl.program_id(2)

    @pl.when(k == 0)
    def _():
        o_ref[...] = jnp.zeros_like(o_ref)

    o_ref[...] += jnp.dot(x_ref[...], w_ref[...],
                          preferred_element_type=jnp.float32)

    @pl.when(k == pl.num_programs(2) - 1)
    def _():
        o_ref[...] = o_ref[...] + b_ref[...]


@functools.partial(jax.jit, static_argnames=("tm", "tn", "tk"))
def embedding_layer_forward(x, weight, bias, *, tm=None, tn=None, tk=None):
    """y = x @ weight.T + bias  (exact nn.Linear.forward semantics).

    x:      (..., input_dim)
    weight: (output_dim, input_dim)   -- PyTorch layout
    bias:   (output_dim,)
    Note: f32 inputs use the TPU's default matmul precision; tolerances are
    documented in the test below.
    """
    in_dim = x.shape[-1]
    out_dim = weight.shape[0]
    lead_shape = x.shape[:-1]

    x2d = x.reshape(-1, in_dim)
    M, K, N = x2d.shape[0], in_dim, out_dim

    gen = _generation_defaults()
    tm = gen["tm"] if tm is None else tm
    tn = gen["tn"] if tn is None else tn
    tk = gen["tk"] if tk is None else tk
    vmem_cap = gen["vmem_cap"]

    sub = _sublane_multiple(x.dtype)
    tm = _pick_tile(M, tm, sub)
    tn = _pick_tile(N, tn, 128)            # >=128 keeps output stores lane-dense
    if K < 128:
        tk = K                             # full-dim block exception: no K pad
    else:
        tk = _pick_tile(K, tk, 128)

    M_pad = _round_up(M, tm)
    N_pad = _round_up(N, tn)
    K_pad = _round_up(K, tk)

    if (M_pad, K_pad) != (M, K):
        x2d = jnp.pad(x2d, ((0, M_pad - M), (0, K_pad - K)))
    # One-time transpose to (K, N): feeds the MXU natively; fused with the pad
    # (if any) by XLA inside this jit.
    w_t = weight.T
    if (K_pad, N_pad) != (K, N):
        w_t = jnp.pad(w_t, ((0, K_pad - K), (0, N_pad - N)))
    b2d = bias.astype(jnp.float32).reshape(1, N)
    if N_pad != N:
        b2d = jnp.pad(b2d, ((0, 0), (0, N_pad - N)))

    grid = (M_pad // tm, N_pad // tn, K_pad // tk)

    out_dtype = x.dtype
    use_acc = jnp.dtype(out_dtype) != jnp.float32
    kernel = _linear_kernel_acc if use_acc else _linear_kernel_f32
    scratch = [pltpu.VMEM((tm, tn), jnp.float32)] if use_acc else []

    xb = jnp.dtype(x.dtype).itemsize
    wb = jnp.dtype(weight.dtype).itemsize
    ob = jnp.dtype(out_dtype).itemsize
    # Double-buffered in/out tiles + optional f32 accumulator + headroom.
    vmem_needed = (2 * (tm * tk * xb + tk * tn * wb + tn * 4 + tm * tn * ob)
                   + (tm * tn * 4 if use_acc else 0))
    vmem_limit = int(min(max(vmem_needed + (4 << 20), 32 << 20), vmem_cap))

    n_i, n_j = M_pad // tm, N_pad // tn
    cost = pl.CostEstimate(
        flops=2 * M_pad * N_pad * K_pad,
        transcendentals=0,
        bytes_accessed=(M_pad * K_pad * xb * n_j        # x re-read per N tile
                        + K_pad * N_pad * wb * n_i      # W re-read per M tile
                        + M_pad * N_pad * ob
                        + N_pad * 4))

    out = pl.pallas_call(
        kernel,
        out_shape=jax.ShapeDtypeStruct((M_pad, N_pad), out_dtype),
        grid_spec=pltpu.PrefetchScalarGridSpec(
            num_scalar_prefetch=0,
            grid=grid,
            in_specs=[
                pl.BlockSpec((tm, tk), lambda i, j, k: (i, k)),   # activations
                pl.BlockSpec((tk, tn), lambda i, j, k: (k, j)),   # W^T (K, N)
                pl.BlockSpec((1, tn), lambda i, j, k: (0, j)),    # bias (f32)
            ],
            out_specs=pl.BlockSpec((tm, tn), lambda i, j, k: (i, j)),
            scratch_shapes=scratch,
        ),
        compiler_params=pltpu.CompilerParams(
            dimension_semantics=("parallel", "parallel", "arbitrary"),
            vmem_limit_bytes=vmem_limit),
        cost_estimate=cost,
    )(x2d, w_t, b2d)

    out = out[:M, :N]
    return out.reshape(*lead_shape, out_dim)


def init_linear_params(key, input_dim, output_dim, dtype=jnp.float32):
    # Deterministic init mirroring nn.Linear's default (uniform +/- 1/sqrt(in)).
    kw, kb = jax.random.split(key)
    bound = 1.0 / (input_dim ** 0.5)
    weight = jax.random.uniform(kw, (output_dim, input_dim), dtype,
                                minval=-bound, maxval=bound)
    bias = jax.random.uniform(kb, (output_dim,), dtype,
                              minval=-bound, maxval=bound)
    return weight, bias


if __name__ == "__main__":
    key = jax.random.PRNGKey(0)
    k_x, k_p, k_x2 = jax.random.split(key, 3)

    input_dim, output_dim = 32, 64
    weight, bias = init_linear_params(k_p, input_dim, output_dim)

    # Small shape consistent with the module: (batch, seq, input_dim).
    x = jax.random.normal(k_x, (2, 8, input_dim), dtype=jnp.float32)
    y = jax.block_until_ready(embedding_layer_forward(x, weight, bias))
    y_ref = x @ weight.T + bias
    assert y.shape == (2, 8, output_dim)
    assert jnp.allclose(y, y_ref, atol=1e-4, rtol=1e-4)

    # Non-divisible flattened batch exercises the M-padding path.
    x2 = jax.random.normal(k_x2, (5, input_dim), dtype=jnp.float32)
    y2 = jax.block_until_ready(embedding_layer_forward(x2, weight, bias))
    assert jnp.allclose(y2, x2 @ weight.T + bias, atol=1e-4, rtol=1e-4)

    # bf16 path exercises the f32-scratch accumulator variant.
    xb16 = x.astype(jnp.bfloat16)
    w16, b16 = weight.astype(jnp.bfloat16), bias.astype(jnp.bfloat16)
    yb = jax.block_until_ready(embedding_layer_forward(xb16, w16, b16))
    yb_ref = (xb16.astype(jnp.float32) @ w16.astype(jnp.float32).T
              + b16.astype(jnp.float32))
    assert jnp.allclose(yb.astype(jnp.float32), yb_ref, atol=5e-2, rtol=5e-2)

    print("KERNEL_OK")
</pallas_src>

<mosaic_0001>
module attributes {stable_mosaic.version = 11 : i64} {
  func.func @_linear_kernel_f32(%arg0: i32, %arg1: i32, %arg2: i32, %arg3: memref<16x32xf32, #tpu.memory_space<vmem>>, %arg4: memref<32x128xf32, #tpu.memory_space<vmem>>, %arg5: memref<1x128xf32, #tpu.memory_space<vmem>>, %arg6: memref<16x128xf32, #tpu.memory_space<vmem>>) attributes {dimension_semantics = [#tpu.dimension_semantics<parallel>, #tpu.dimension_semantics<parallel>, #tpu.dimension_semantics<arbitrary>], iteration_bounds = array<i64: 1, 1, 1>, scalar_prefetch = 0 : i64, scratch_operands = 0 : i64, tpu.core_type = #tpu.core_type<tc>, window_params = [{transform_indices = @transform_0, window_bounds = array<i64: 16, 32>}, {transform_indices = @transform_1, window_bounds = array<i64: 32, 128>}, {transform_indices = @transform_2, window_bounds = array<i64: 1, 128>}, {transform_indices = @transform_3, window_bounds = array<i64: 16, 128>}]} {
    %c0_i32 = arith.constant 0 : i32
    %0 = arith.cmpi eq, %arg2, %c0_i32 : i32
    %1 = arith.extui %0 : i1 to i32
    %c0_i32_0 = arith.constant 0 : i32
    %2 = arith.cmpi ne, %1, %c0_i32_0 : i32
    scf.if %2 {
      %cst_10 = arith.constant 0.000000e+00 : f32
      %12 = vector.broadcast %cst_10 : f32 to vector<16x128xf32>
      %c0_11 = arith.constant 0 : index
      %c0_12 = arith.constant 0 : index
      %13 = vector.load %arg6[%c0_11, %c0_12] : memref<16x128xf32, #tpu.memory_space<vmem>>, vector<16x128xf32>
      tpu.vector_store %arg6[%c0_11, %c0_12], %12 {strides = array<i32>} : memref<16x128xf32, #tpu.memory_space<vmem>>, vector<16x128xf32>,
    } else {
    }
    %c0 = arith.constant 0 : index
    %c0_1 = arith.constant 0 : index
    %3 = vector.load %arg6[%c0, %c0_1] : memref<16x128xf32, #tpu.memory_space<vmem>>, vector<16x128xf32>
    %c0_2 = arith.constant 0 : index
    %c0_3 = arith.constant 0 : index
    %4 = vector.load %arg3[%c0_2, %c0_3] : memref<16x32xf32, #tpu.memory_space<vmem>>, vector<16x32xf32>
    %c0_4 = arith.constant 0 : index
    %c0_5 = arith.constant 0 : index
    %5 = vector.load %arg4[%c0_4, %c0_5] : memref<32x128xf32, #tpu.memory_space<vmem>>, vector<32x128xf32>
    %cst = arith.constant dense<0.000000e+00> : vector<16x128xf32>
    %6 = tpu.matmul %4, %5, %cst {dimension_numbers = #tpu.dot_dimension_numbers<[1], [0], [0], [1], [0, 0, 1, 1], [], []>} : vector<16x32xf32>, vector<32x128xf32>, vector<16x128xf32> -> vector<16x128xf32>
    %7 = arith.addf %3, %6 : vector<16x128xf32>
    %c0_6 = arith.constant 0 : index
    %c0_7 = arith.constant 0 : index
    %8 = vector.load %arg6[%c0_6, %c0_7] : memref<16x128xf32, #tpu.memory_space<vmem>>, vector<16x128xf32>
    tpu.vector_store %arg6[%c0_6, %c0_7], %7 {strides = array<i32>} : memref<16x128xf32, #tpu.memory_space<vmem>>, vector<16x128xf32>,
    %c0_i32_8 = arith.constant 0 : i32
    %9 = arith.cmpi eq, %arg2, %c0_i32_8 : i32
    %10 = arith.extui %9 : i1 to i32
    %c0_i32_9 = arith.constant 0 : i32
    %11 = arith.cmpi ne, %10, %c0_i32_9 : i32
    scf.if %11 {
      %c0_10 = arith.constant 0 : index
      %c0_11 = arith.constant 0 : index
      %12 = vector.load %arg6[%c0_10, %c0_11] : memref<16x128xf32, #tpu.memory_space<vmem>>, vector<16x128xf32>
      %c0_12 = arith.constant 0 : index
      %c0_13 = arith.constant 0 : index
      %13 = vector.load %arg5[%c0_12, %c0_13] : memref<1x128xf32, #tpu.memory_space<vmem>>, vector<1x128xf32>
      %14 = vector.broadcast %13 : vector<1x128xf32> to vector<16x128xf32>
      %15 = arith.addf %12, %14 : vector<16x128xf32>
      %c0_14 = arith.constant 0 : index
      %c0_15 = arith.constant 0 : index
      %16 = vector.load %arg6[%c0_14, %c0_15] : memref<16x128xf32, #tpu.memory_space<vmem>>, vector<16x128xf32>
      tpu.vector_store %arg6[%c0_14, %c0_15], %15 {strides = array<i32>} : memref<16x128xf32, #tpu.memory_space<vmem>>, vector<16x128xf32>,
    } else {
    }
    return
  }
  func.func @transform_0(%arg0: i32, %arg1: i32, %arg2: i32) -> (i32, i32) {
    %c0_i32 = arith.constant 0 : i32
    return %arg0, %arg2 : i32, i32
  }
  func.func @transform_1(%arg0: i32, %arg1: i32, %arg2: i32) -> (i32, i32) {
    %c0_i32 = arith.constant 0 : i32
    return %arg2, %arg1 : i32, i32
  }
  func.func @transform_2(%arg0: i32, %arg1: i32, %arg2: i32) -> (i32, i32) {
    %c0_i32 = arith.constant 0 : i32
    %c0_i32_0 = arith.constant 0 : i32
    return %c0_i32, %arg1 : i32, i32
  }
  func.func @transform_3(%arg0: i32, %arg1: i32, %arg2: i32) -> (i32, i32) {
    %c0_i32 = arith.constant 0 : i32
    return %arg0, %arg1 : i32, i32
  }
}

</mosaic_0001>

<llo_original>
// kernel: embedding_layer_forward.1
$region0: #{embedding_layer_forward.1}
  #allocation0 [shape = 'u32[]', space=smem, size = 0x4, offset = 0x4, fixed_abs, tag = 'smem constant byte address 0x4 - core index']
  #allocation1 [shape = 'u32[144,128]{1,0:T(1,128)}', space=vmem, size = 0x12000, scoped, tag = 'internal scratch']
  %s0 = inlined_call_operand.vmem [shape: f32[16,32], index: 0, kind: input, shape index: {}]
  %s1 = inlined_call_operand.vmem [shape: f32[32,128], index: 1, kind: input, shape index: {}]
  %s2 = inlined_call_operand.vmem [shape: f32[1,128], index: 2, kind: input, shape index: {}]
  %s3 = inlined_call_operand.vmem [shape: f32[16,128], index: 3, kind: output, shape index: {}]
  %s4 = sld [smem:[#allocation0]]
  $region30: #{embedding_layer_forward.1} parent=0
    _
  %s6 = ssub.s32 1, %s4
  %s7 = scalar_select 0, %s6, %s4
  // Predicated region
  $region2: #{embedding_layer_forward.1} parent=0 // pred_check
    _
  $region3: #{embedding_layer_forward.1} parent=0 // pred_check_branch
    %9 = sbr.rel (0) target = $region5
  $region4: #{embedding_layer_forward.1} parent=0 // pred_region
    _
  $region5: #{embedding_layer_forward.1} parent=0 // pred_fallthru
    _
  // Predicated region
  $region6: #{embedding_layer_forward.1} parent=0 // pred_check
    _
  $region7: #{embedding_layer_forward.1} parent=0 // pred_check_branch
    %11 = sbr.rel (0) target = $region9
  $region8: #{embedding_layer_forward.1} parent=0 // pred_region
    _
  $region9: #{embedding_layer_forward.1} parent=0 // pred_fallthru
    _
  // Predicated region
  $region10: #{embedding_layer_forward.1} parent=0 // pred_check
    _
  $region11: #{embedding_layer_forward.1} parent=0 // pred_check_branch
    %13 = sbr.rel (0) target = $region13
  $region12: #{embedding_layer_forward.1} parent=0 // pred_region
    _
  $region13: #{embedding_layer_forward.1} parent=0 // pred_fallthru
    _
  %p14 = scmp.eq.s32.totalorder 0, 0
  // Predicated region
  $region14: #{embedding_layer_forward.1} parent=0 // pred_check
    %p15 = pneg %p14
  $region15: #{embedding_layer_forward.1} parent=0 // pred_check_branch
    %17 = sbr.rel (%p15) target = $region17
  $region16: #{embedding_layer_forward.1} parent=0 // pred_region
    %18 = vst [vmem:[%s3] sm:$0xff] 0.0
    %19 = vst [vmem:[%s3 + $0x8] sm:$0xff] 0.0
  $region17: #{embedding_layer_forward.1} parent=0 // pred_fallthru
    _
  %v20 = vld [vmem:[%s3] sm:$0xff]
  %v21 = vld [vmem:[%s3 + $0x8] sm:$0xff]
  %v22 = vld [vmem:[%s0] sm:$0xff]
  %v23 = vld [vmem:[%s0 + $0x8] sm:$0xff]
  %v24 = vld [vmem:[%s1] sm:$0xff]
  %v25 = vld [vmem:[%s1 + $0x8] sm:$0xff]
  %v26 = vld [vmem:[%s1 + $0x10] sm:$0xff]
  %v27 = vld [vmem:[%s1 + $0x18] sm:$0xff]
  %vm28 = vcmask 261120
  %v30 = vsel %vm28, %v22, 0
  %v33 = vsel %vm28, %v23, 0
  %35 = vmatprep.subr.mxu0 0.0
  %36 = vmatpush1.msra.mxu0 %v24
  %37 = vmatprep.subr.mxu0 0.0
  %38 = vmatpush1.msra.mxu0 %v25
  %39 = vmatprep.subr.mxu0 0.0
  %40 = vmatpush1.msra.mxu0 %v26
  %41 = vmatprep.subr.mxu0 0.0
  %42 = vmatpush1.msra.mxu0 %v27
  %43 = vmatprep.subr.mxu0 0.0
  %44 = vmatpush1.msra.mxu0 0.0
  %45 = vmatprep.subr.mxu0 0.0
  %46 = vmatpush1.msra.mxu0 0.0
  %47 = vmatprep.subr.mxu0 0.0
  %48 = vmatpush1.msra.mxu0 0.0
  %49 = vmatprep.subr.mxu0 0.0
  %50 = vmatpush1.msra.mxu0 0.0
  %51 = vmatprep.subr.mxu0 0.0
  %52 = vmatpush1.msra.mxu0 0.0
  %53 = vmatprep.subr.mxu0 0.0
  %54 = vmatpush1.msra.mxu0 0.0
  %55 = vmatprep.subr.mxu0 0.0
  %56 = vmatpush1.msra.mxu0 0.0
  %57 = vmatprep.subr.mxu0 0.0
  %58 = vmatpush1.msra.mxu0 0.0
  %59 = vmatprep.subr.mxu0 0.0
  %60 = vmatpush1.msra.mxu0 0.0
  %61 = vmatprep.subr.mxu0 0.0
  %62 = vmatpush1.msra.mxu0 0.0
  %63 = vmatprep.subr.mxu0 0.0
  %64 = vmatpush1.msra.mxu0 0.0
  %65 = vmatprep.subr.mxu0 0.0
  %66 = vmatpush1.msra.mxu0 0.0
  %67 = vmatprep.subr.mxu0 0.0
  %68 = vmatpush1.msra.mxu0 0.0
  %69 = vmatprep.subr.mxu0 0.0
  %70 = vmatpush1.msra.mxu0 0.0
  %71 = vmatprep.subr.mxu0 0.0
  %72 = vmatpush1.msra.mxu0 0.0
  %73 = vmatprep.subr.mxu0 0.0
  %74 = vmatpush1.msra.mxu0 0.0
  %75 = vmatprep.subr.mxu0 0.0
  %76 = vmatpush1.msra.mxu0 0.0
  %77 = vmatprep.subr.mxu0 0.0
  %78 = vmatpush1.msra.mxu0 0.0
  %79 = vmatprep.subr.mxu0 0.0
  %80 = vmatpush1.msra.mxu0 0.0
  %81 = vmatprep.subr.mxu0 0.0
  %82 = vmatpush1.msra.mxu0 0.0
  %83 = vmatprep.subr.mxu0 0.0
  %84 = vmatpush1.msra.mxu0 0.0
  %85 = vmatprep.subr.mxu0 0.0
  %86 = vmatpush1.msra.mxu0 0.0
  %87 = vmatprep.subr.mxu0 0.0
  %88 = vmatpush1.msra.mxu0 0.0
  %89 = vmatprep.subr.mxu0 0.0
  %90 = vmatpush1.msra.mxu0 0.0
  %91 = vmatprep.subr.mxu0 0.0
  %92 = vmatpush1.msra.mxu0 0.0
  %93 = vmatprep.subr.mxu0 0.0
  %94 = vmatpush1.msra.mxu0 0.0
  %95 = vmatprep.subr.mxu0 0.0
  %96 = vmatpush1.msra.mxu0 0.0
  %97 = vmatprep.subr.mxu0 0.0
  %98 = vmatpush1.msra.mxu0 0.0
  %99 = vmatprep.mubr.f32.mxu0 0.0
  %100 = vmatmul.mubr.f32.gmra.mrb[0].mxu0 %v30
  %v101 = vpop.f32.mrb[0].mxu0
  %v102 = vadd.f32 0.0, %v101
  %v103 = vpop.f32.mrb[0].mxu0
  %104 = vmatprep.mubr.f32.mxu0 0.0
  %105 = vmatmul.mubr.f32.gmra.mrb[0].mxu0 %v33
  %v106 = vpop.f32.mrb[0].mxu0
  %v107 = vadd.f32 0.0, %v106
  %v108 = vpop.f32.mrb[0].mxu0
  %109 = vdwg.mxu0
  %v110 = vadd.f32 %v20, %v102
  %v111 = vadd.f32 %v21, %v107
  %112 = vst [vmem:[%s3] sm:$0xff] %v110
  %113 = vst [vmem:[%s3 + $0x8] sm:$0xff] %v111
  // Predicated region
  $region18: #{embedding_layer_forward.1} parent=0 // pred_check
    %p114 = pneg %p14
  $region19: #{embedding_layer_forward.1} parent=0 // pred_check_branch
    %116 = sbr.rel (%p114) target = $region21
  $region20: #{embedding_layer_forward.1} parent=0 // pred_region
    %v117 = vld [vmem:[%s3] sm:$0xff]
    %v118 = vld [vmem:[%s3 + $0x8] sm:$0xff]
    %v119 = vld [vmem:[%s2] sm:$0x1]
    %v121 = vlaneseq
    %v122 = vshrl.u32 %v121, 7
    %v123 = vsub.s32 0, %v122
    %v124 = vrot.slane %v119, %v123
    %v126 = vadd.f32 %v117, %v124
    %v127 = vadd.f32 %v118, %v124
    %128 = vst [vmem:[%s3] sm:$0xff] %v126
    %129 = vst [vmem:[%s3 + $0x8] sm:$0xff] %v127
  $region21: #{embedding_layer_forward.1} parent=0 // pred_fallthru
    _
  // Predicated region
  $region22: #{embedding_layer_forward.1} parent=0 // pred_check
    _
  $region23: #{embedding_layer_forward.1} parent=0 // pred_check_branch
    %131 = sbr.rel (0) target = $region25
  $region24: #{embedding_layer_forward.1} parent=0 // pred_region
    _
  $region25: #{embedding_layer_forward.1} parent=0 // pred_fallthru
    _
  // Predicated region
  $region26: #{embedding_layer_forward.1} parent=0 // pred_check
    _
  $region27: #{embedding_layer_forward.1} parent=0 // pred_check_branch
    %133 = sbr.rel (0) target = $region29
  $region28: #{embedding_layer_forward.1} parent=0 // pred_region
    _
  $region29: #{embedding_layer_forward.1} parent=0 // pred_fallthru
    _

</llo_original>
